<compile_context>
chip_gen: v7x
topology: tpu7x:2x2x1
jax: 0.10.0
libtpu: 0.0.40
codegen_flags: <defaults>
</compile_context>

<pallas_src>
import functools

import jax
import jax.numpy as jnp
from jax.experimental import pallas as pl
from jax.experimental.pallas import tpu as pltpu


def _round_up(x, m):
    return ((x + m - 1) // m) * m


def _cdiv(a, b):
    return -(-a // b)


def _vmem_budget_bytes():
    """~3/4 of physical VMEM (48 MiB on v7x, 96 MiB on v5e/v6e)."""
    cap = 64 << 20  # conservative fallback = v7x physical
    try:
        cap = int(getattr(pltpu.get_tpu_info(), "vmem_capacity_bytes", cap))
    except Exception:
        pass
    return (cap * 3) // 4


def _select_tiles(n_tok, d_model, hidden, x_itemsize, out_itemsize,
                  needs_scratch):
    """Pick (token tile, hidden tile, vmem limit) for the given problem."""
    # Hidden (reduction) tile: lane-dense multiples of 128 when possible.
    if hidden % 512 == 0:
        th = 512
    elif hidden % 256 == 0:
        th = 256
    elif hidden % 128 == 0:
        th = 128
    else:
        th = hidden  # toy fallback: single reduction step

    # Token tile == flops per streamed weight byte.  Default toward 1024, but
    #  (a) no larger than the (16-rounded) token count,
    #  (b) keep >=2 tiles on the parallel axis when there is enough work so
    #      both v7x TensorCores get a token tile,
    #  (c) shrink until the double-buffered working set fits the VMEM budget
    #      (v5e's 16 MiB scoped default / v7x's 64 MiB physical).
    tm = min(1024, _round_up(n_tok, 16))
    if n_tok >= 256 and _cdiv(n_tok, tm) < 2:
        tm = min(tm, _round_up(_cdiv(n_tok, 2), 16))

    def vmem_need(tm_, th_):
        need = 2 * (tm_ * d_model * x_itemsize          # x tile (2 buffers)
                    + d_model * th_ * 2                  # W1 chunk (bf16)
                    + th_ * 4                            # b1 chunk
                    + th_ * d_model * 2                  # W2 chunk (bf16)
                    + d_model * 4                        # b2
                    + tm_ * d_model * out_itemsize)      # out tile
        if needs_scratch:
            need += tm_ * d_model * 4                    # f32 accumulator
        return need

    budget = _vmem_budget_bytes()
    while tm > 128 and vmem_need(tm, th) > budget:
        tm = _round_up(tm // 2, 16)
    while th > 128 and hidden % (th // 2) == 0 and vmem_need(tm, th) > budget:
        th //= 2

    return tm, th, budget


def _ffn_kernel_inplace(x_ref, w1_ref, b1_ref, w2_ref, b2_ref, o_ref):
    """f32-output path: accumulate fc2 partials directly into the resident
    output block (no VMEM scratch).  grid = (token tiles, hidden chunks)."""
    k = pl.program_id(1)

    @pl.when(k == 0)
    def _():
        o_ref[...] = jnp.broadcast_to(b2_ref[...], o_ref.shape)

    # fc1 chunk: bf16 operands on the MXU (x cast on the VPU), f32 accumulate.
    h = jnp.dot(x_ref[...].astype(jnp.bfloat16), w1_ref[...],
                preferred_element_type=jnp.float32)
    h = jnp.maximum(h + b1_ref[...], 0.0)  # bias + ReLU; dropout == identity
    # fc2 partial contraction.
    o_ref[...] += jnp.dot(h.astype(jnp.bfloat16), w2_ref[...],
                          preferred_element_type=jnp.float32)


def _ffn_kernel_scratch(x_ref, w1_ref, b1_ref, w2_ref, b2_ref, o_ref, acc_ref):
    """Generic path (bf16/other output dtype): accumulate in an f32 scratch,
    downcast once on the last hidden chunk."""
    k = pl.program_id(1)

    @pl.when(k == 0)
    def _():
        acc_ref[...] = jnp.broadcast_to(b2_ref[...], acc_ref.shape)

    h = jnp.dot(x_ref[...].astype(jnp.bfloat16), w1_ref[...],
                preferred_element_type=jnp.float32)
    h = jnp.maximum(h + b1_ref[...], 0.0)
    acc_ref[...] += jnp.dot(h.astype(jnp.bfloat16), w2_ref[...],
                            preferred_element_type=jnp.float32)

    @pl.when(k == pl.num_programs(1) - 1)
    def _():
        o_ref[...] = acc_ref[...].astype(o_ref.dtype)


@functools.partial(jax.jit, static_argnames=("tm", "th", "vmem_limit"))
def _ffn_impl(x, w1, b1, w2, b2, *, tm, th, vmem_limit):
    out_dtype = x.dtype
    B, S, d_model = x.shape
    _, hidden = w1.shape
    n_tok = B * S

    x2 = x.reshape(n_tok, d_model)          # no pad, no host-side cast
    w1_bf = w1.astype(jnp.bfloat16)         # no-op if weights stored bf16
    w2_bf = w2.astype(jnp.bfloat16)
    b1_2d = b1.reshape(1, hidden).astype(jnp.float32)
    b2_2d = b2.reshape(1, d_model).astype(jnp.float32)

    n_i = _cdiv(n_tok, tm)
    n_k = hidden // th
    grid = (n_i, n_k)

    out_itemsize = jnp.dtype(out_dtype).itemsize
    accumulate_in_out = (out_dtype == jnp.float32)

    cost = pl.CostEstimate(
        flops=4 * n_i * tm * d_model * hidden,            # two matmuls
        transcendentals=0,
        bytes_accessed=int(
            n_tok * d_model * x2.dtype.itemsize           # x: resident over k
            + n_i * 2 * d_model * hidden * 2              # W1+W2 per token tile
            + n_i * (hidden + d_model) * 4                # biases
            + n_tok * d_model * out_itemsize),            # output writeback
    )

    in_specs = [
        pl.BlockSpec((tm, d_model), lambda i, k: (i, 0)),     # x tile
        pl.BlockSpec((d_model, th), lambda i, k: (0, k)),     # W1 chunk
        pl.BlockSpec((1, th),       lambda i, k: (0, k)),     # b1 chunk
        pl.BlockSpec((th, d_model), lambda i, k: (k, 0)),     # W2 chunk
        pl.BlockSpec((1, d_model),  lambda i, k: (0, 0)),     # b2
    ]
    out_spec = pl.BlockSpec((tm, d_model), lambda i, k: (i, 0))

    if accumulate_in_out:
        kernel = _ffn_kernel_inplace
        scratch_shapes = []
    else:
        kernel = _ffn_kernel_scratch
        scratch_shapes = [pltpu.VMEM((tm, d_model), jnp.float32)]

    out = pl.pallas_call(
        kernel,
        out_shape=jax.ShapeDtypeStruct((n_tok, d_model), out_dtype),
        grid_spec=pltpu.PrefetchScalarGridSpec(
            num_scalar_prefetch=0,
            grid=grid,
            in_specs=in_specs,
            out_specs=out_spec,
            scratch_shapes=scratch_shapes,
        ),
        compiler_params=pltpu.CompilerParams(
            dimension_semantics=("parallel", "arbitrary"),
            vmem_limit_bytes=int(vmem_limit)),
        cost_estimate=cost,
    )(x2, w1_bf, b1_2d, w2_bf, b2_2d)

    return out.reshape(B, S, d_model)


def positionwise_ffn(x, w1, b1, w2, b2, *, tm=None, th=None):
    """x: [B, S, d_model] -> fc2(dropout(relu(fc1(x)))); dropout = identity."""
    B, S, d_model = x.shape
    d_in, hidden = w1.shape
    assert d_in == d_model and w2.shape == (hidden, d_model)
    assert b1.shape == (hidden,) and b2.shape == (d_model,)

    n_tok = B * S
    itemsize = jnp.dtype(x.dtype).itemsize
    needs_scratch = (x.dtype != jnp.float32)
    auto_tm, auto_th, vmem_limit = _select_tiles(
        n_tok, d_model, hidden, itemsize, itemsize, needs_scratch)
    tm = auto_tm if tm is None else tm
    th = auto_th if th is None else th
    assert hidden % th == 0
    return _ffn_impl(x, w1, b1, w2, b2, tm=tm, th=th, vmem_limit=vmem_limit)


def ffn_reference_bf16(x, w1, b1, w2, b2):
    """Same numerics as the kernel (bf16 matmul operands, f32 accumulation)."""
    B, S, d_model = x.shape
    xb = x.reshape(-1, d_model).astype(jnp.bfloat16)
    h = jnp.dot(xb, w1.astype(jnp.bfloat16),
                preferred_element_type=jnp.float32) + b1
    h = jnp.maximum(h, 0.0)
    y = jnp.dot(h.astype(jnp.bfloat16), w2.astype(jnp.bfloat16),
                preferred_element_type=jnp.float32) + b2
    return y.reshape(B, S, d_model).astype(x.dtype)


def ffn_reference_f32(x, w1, b1, w2, b2):
    return jnp.maximum(x @ w1 + b1, 0.0) @ w2 + b2


def init_params(key, d_model, hidden):
    """Deterministic init mimicking PyTorch nn.Linear (U(-1/sqrt(fan_in), +))."""
    k1, k2, k3, k4 = jax.random.split(key, 4)
    bound1 = 1.0 / (d_model ** 0.5)
    bound2 = 1.0 / (hidden ** 0.5)
    # Stored as (in_features, out_features): kernel computes x @ W + b,
    # equivalent to PyTorch's x @ weight.T + bias.
    w1 = jax.random.uniform(k1, (d_model, hidden), jnp.float32, -bound1, bound1)
    b1 = jax.random.uniform(k2, (hidden,), jnp.float32, -bound1, bound1)
    w2 = jax.random.uniform(k3, (hidden, d_model), jnp.float32, -bound2, bound2)
    b2 = jax.random.uniform(k4, (d_model,), jnp.float32, -bound2, bound2)
    return w1, b1, w2, b2


if __name__ == "__main__":
    key = jax.random.PRNGKey(0)

    # --- Test 1: f32 output (in-place accumulation path), multiple token
    #             tiles and multiple hidden reduction steps. ---
    B, S, d_model, hidden = 2, 8, 128, 512
    kx, kp, key = jax.random.split(key, 3)
    x = jax.random.normal(kx, (B, S, d_model), jnp.float32)
    w1, b1, w2, b2 = init_params(kp, d_model, hidden)
    # Store weights bf16 upstream so the in-wrapper astype is a no-op.
    w1_bf, w2_bf = w1.astype(jnp.bfloat16), w2.astype(jnp.bfloat16)

    out = jax.block_until_ready(
        positionwise_ffn(x, w1_bf, b1, w2_bf, b2, tm=8, th=128))
    assert out.shape == (B, S, d_model) and out.dtype == jnp.float32
    ref_bf16 = ffn_reference_bf16(x, w1, b1, w2, b2)
    ref_f32 = ffn_reference_f32(x, w1, b1, w2, b2)
    assert jnp.allclose(out, ref_bf16, atol=2e-3, rtol=2e-3), "bf16-path mismatch"
    assert jnp.allclose(out, ref_f32, atol=0.1, rtol=0.1), "f32 sanity mismatch"

    # Default tile selection path.
    out_def = jax.block_until_ready(positionwise_ffn(x, w1_bf, b1, w2_bf, b2))
    assert jnp.allclose(out_def, ref_bf16, atol=2e-3, rtol=2e-3), "default-tile mismatch"

    # --- Test 2: ragged token count (no host-side pad; Pallas masks the
    #             ragged last block's stores). ---
    B2, S2, dm2, hid2 = 3, 5, 128, 256
    kx2, kp2, key = jax.random.split(key, 3)
    x2 = jax.random.normal(kx2, (B2, S2, dm2), jnp.float32)
    p2 = init_params(kp2, dm2, hid2)
    out2 = jax.block_until_ready(positionwise_ffn(x2, *p2, th=128))
    assert out2.shape == (B2, S2, dm2)
    ref2 = ffn_reference_bf16(x2, *p2)
    assert jnp.allclose(out2, ref2, atol=2e-3, rtol=2e-3), "ragged-path mismatch"

    # --- Test 3: bf16 activations/output (scratch-accumulator path). ---
    x3 = x.astype(jnp.bfloat16)
    out3 = jax.block_until_ready(
        positionwise_ffn(x3, w1_bf, b1, w2_bf, b2, tm=8, th=128))
    assert out3.dtype == jnp.bfloat16
    ref3 = ffn_reference_bf16(x3, w1, b1, w2, b2)
    assert jnp.allclose(out3.astype(jnp.float32), ref3.astype(jnp.float32),
                        atol=3e-2, rtol=3e-2), "bf16-output mismatch"

    print("KERNEL_OK")
</pallas_src>

<mosaic_0001>
module attributes {stable_mosaic.version = 11 : i64} {
  func.func @_ffn_kernel_inplace(%arg0: i32, %arg1: i32, %arg2: memref<8x128xf32, #tpu.memory_space<vmem>>, %arg3: memref<128x128xbf16, #tpu.memory_space<vmem>>, %arg4: memref<1x128xf32, #tpu.memory_space<vmem>>, %arg5: memref<128x128xbf16, #tpu.memory_space<vmem>>, %arg6: memref<1x128xf32, #tpu.memory_space<vmem>>, %arg7: memref<8x128xf32, #tpu.memory_space<vmem>>) attributes {dimension_semantics = [#tpu.dimension_semantics<parallel>, #tpu.dimension_semantics<arbitrary>], iteration_bounds = array<i64: 2, 4>, scalar_prefetch = 0 : i64, scratch_operands = 0 : i64, tpu.core_type = #tpu.core_type<tc>, window_params = [{transform_indices = @transform_0, window_bounds = array<i64: 8, 128>}, {transform_indices = @transform_1, window_bounds = array<i64: 128, 128>}, {transform_indices = @transform_2, window_bounds = array<i64: 1, 128>}, {transform_indices = @transform_3, window_bounds = array<i64: 128, 128>}, {pipeline_mode = #tpu.pipeline_mode<synchronous>, transform_indices = @transform_4, window_bounds = array<i64: 1, 128>}, {transform_indices = @transform_5, window_bounds = array<i64: 8, 128>}]} {
    %c0_i32 = arith.constant 0 : i32
    %0 = arith.cmpi eq, %arg1, %c0_i32 : i32
    %1 = arith.extui %0 : i1 to i32
    %c0_i32_0 = arith.constant 0 : i32
    %2 = arith.cmpi ne, %1, %c0_i32_0 : i32
    scf.if %2 {
      %c0_14 = arith.constant 0 : index
      %c0_15 = arith.constant 0 : index
      %18 = vector.load %arg6[%c0_14, %c0_15] : memref<1x128xf32, #tpu.memory_space<vmem>>, vector<1x128xf32>
      %19 = vector.shape_cast %18 : vector<1x128xf32> to vector<1x128xf32>
      %20 = vector.broadcast %19 : vector<1x128xf32> to vector<8x128xf32>
      %c0_16 = arith.constant 0 : index
      %c0_17 = arith.constant 0 : index
      %21 = vector.load %arg7[%c0_16, %c0_17] : memref<8x128xf32, #tpu.memory_space<vmem>>, vector<8x128xf32>
      tpu.vector_store %arg7[%c0_16, %c0_17], %20 {strides = array<i32>} : memref<8x128xf32, #tpu.memory_space<vmem>>, vector<8x128xf32>,
    } else {
    }
    %c0 = arith.constant 0 : index
    %c0_1 = arith.constant 0 : index
    %3 = vector.load %arg2[%c0, %c0_1] : memref<8x128xf32, #tpu.memory_space<vmem>>, vector<8x128xf32>
    %4 = arith.truncf %3 : vector<8x128xf32> to vector<8x128xbf16>
    %c0_2 = arith.constant 0 : index
    %c0_3 = arith.constant 0 : index
    %5 = vector.load %arg3[%c0_2, %c0_3] : memref<128x128xbf16, #tpu.memory_space<vmem>>, vector<128x128xbf16>
    %cst = arith.constant dense<0.000000e+00> : vector<8x128xf32>
    %6 = tpu.matmul %4, %5, %cst {dimension_numbers = #tpu.dot_dimension_numbers<[1], [0], [0], [1], [0, 0, 1, 1], [], []>} : vector<8x128xbf16>, vector<128x128xbf16>, vector<8x128xf32> -> vector<8x128xf32>
    %c0_4 = arith.constant 0 : index
    %c0_5 = arith.constant 0 : index
    %7 = vector.load %arg4[%c0_4, %c0_5] : memref<1x128xf32, #tpu.memory_space<vmem>>, vector<1x128xf32>
    %8 = vector.broadcast %7 : vector<1x128xf32> to vector<8x128xf32>
    %9 = arith.addf %6, %8 : vector<8x128xf32>
    %cst_6 = arith.constant 0.000000e+00 : f32
    %10 = vector.broadcast %cst_6 : f32 to vector<8x128xf32>
    %11 = arith.maximumf %9, %10 : vector<8x128xf32>
    %c0_7 = arith.constant 0 : index
    %c0_8 = arith.constant 0 : index
    %12 = vector.load %arg7[%c0_7, %c0_8] : memref<8x128xf32, #tpu.memory_space<vmem>>, vector<8x128xf32>
    %13 = arith.truncf %11 : vector<8x128xf32> to vector<8x128xbf16>
    %c0_9 = arith.constant 0 : index
    %c0_10 = arith.constant 0 : index
    %14 = vector.load %arg5[%c0_9, %c0_10] : memref<128x128xbf16, #tpu.memory_space<vmem>>, vector<128x128xbf16>
    %cst_11 = arith.constant dense<0.000000e+00> : vector<8x128xf32>
    %15 = tpu.matmul %13, %14, %cst_11 {dimension_numbers = #tpu.dot_dimension_numbers<[1], [0], [0], [1], [0, 0, 1, 1], [], []>} : vector<8x128xbf16>, vector<128x128xbf16>, vector<8x128xf32> -> vector<8x128xf32>
    %16 = arith.addf %12, %15 : vector<8x128xf32>
    %c0_12 = arith.constant 0 : index
    %c0_13 = arith.constant 0 : index
    %17 = vector.load %arg7[%c0_12, %c0_13] : memref<8x128xf32, #tpu.memory_space<vmem>>, vector<8x128xf32>
    tpu.vector_store %arg7[%c0_12, %c0_13], %16 {strides = array<i32>} : memref<8x128xf32, #tpu.memory_space<vmem>>, vector<8x128xf32>,
    return
  }
  func.func @transform_0(%arg0: i32, %arg1: i32) -> (i32, i32) {
    %c0_i32 = arith.constant 0 : i32
    %c0_i32_0 = arith.constant 0 : i32
    return %arg0, %c0_i32 : i32, i32
  }
  func.func @transform_1(%arg0: i32, %arg1: i32) -> (i32, i32) {
    %c0_i32 = arith.constant 0 : i32
    %c0_i32_0 = arith.constant 0 : i32
    return %c0_i32, %arg1 : i32, i32
  }
  func.func @transform_2(%arg0: i32, %arg1: i32) -> (i32, i32) {
    %c0_i32 = arith.constant 0 : i32
    %c0_i32_0 = arith.constant 0 : i32
    return %c0_i32, %arg1 : i32, i32
  }
  func.func @transform_3(%arg0: i32, %arg1: i32) -> (i32, i32) {
    %c0_i32 = arith.constant 0 : i32
    %c0_i32_0 = arith.constant 0 : i32
    return %arg1, %c0_i32 : i32, i32
  }
  func.func @transform_4(%arg0: i32, %arg1: i32) -> (i32, i32) {
    %c0_i32 = arith.constant 0 : i32
    %c0_i32_0 = arith.constant 0 : i32
    %c0_i32_1 = arith.constant 0 : i32
    return %c0_i32, %c0_i32_0 : i32, i32
  }
  func.func @transform_5(%arg0: i32, %arg1: i32) -> (i32, i32) {
    %c0_i32 = arith.constant 0 : i32
    %c0_i32_0 = arith.constant 0 : i32
    return %arg0, %c0_i32 : i32, i32
  }
}

</mosaic_0001>

<llo_original>
// kernel: _ffn_impl.1
$region0: #{_ffn_impl.1}
  #allocation0 [shape = 'u32[]', space=smem, size = 0x4, offset = 0x4, fixed_abs, tag = 'smem constant byte address 0x4 - core index']
  #allocation1 [shape = 'u32[144,128]{1,0:T(1,128)}', space=vmem, size = 0x12000, scoped, tag = 'internal scratch']
  %s0 = inlined_call_operand.hbm [shape: f32[16,128], index: 0, kind: input, shape index: {}]
  %s1 = inlined_call_operand.hbm [shape: bf16[128,512], index: 1, kind: input, shape index: {}]
  %s2 = inlined_call_operand.vmem [shape: f32[1,512], index: 2, kind: input, shape index: {}]
  %s3 = inlined_call_operand.hbm [shape: bf16[512,128], index: 3, kind: input, shape index: {}]
  %s4 = inlined_call_operand.vmem [shape: f32[1,128], index: 4, kind: input, shape index: {}]
  %s5 = inlined_call_operand.hbm [shape: f32[16,128], index: 5, kind: output, shape index: {}]
  %s6 = sld [smem:[#allocation0]]
  $region69: #{_ffn_impl.1} parent=0
    _
  %s8 = ssub.s32 1, %s6
  %s9 = scalar_select 0, %s8, %s6
  $region1: #{_ffn_impl.1} parent=0
    #allocation2 [shape = 'u8[8192]{0}', space=vmem, size = 0x2000, scoped, tag = 'input window, operand 0']
    #allocation3 [shape = 's32[2]{0}', space=sflag, size = 0x8, scoped, tag = 'scoped memory for _ffn_impl.1']
    #allocation4 [shape = 's32[2]{0}', space=sflag, size = 0x8, scoped, tag = 'scoped memory for _ffn_impl.1']
    #allocation5 [shape = 'u8[65536]{0}', space=vmem, size = 0x10000, scoped, tag = 'input window, operand 1']
    #allocation6 [shape = 's32[2]{0}', space=sflag, size = 0x8, scoped, tag = 'scoped memory for _ffn_impl.1']
    #allocation7 [shape = 'u8[65536]{0}', space=vmem, size = 0x10000, scoped, tag = 'input window, operand 3']
    #allocation8 [shape = 'u8[8192]{0}', space=vmem, size = 0x2000, scoped, tag = 'output window, operand 0']
    %10 = vsyncpa [#allocation3], 0
    %s11 = scalar_lea.sflag [#allocation3], 1
    %12 = vsyncpa %s11, 0
    %13 = vsyncpa [#allocation6], 0
    %s14 = scalar_lea.sflag [#allocation6], 1
    %15 = vsyncpa %s14, 0
    %16 = vsyncpa [#allocation4], 0
    %s17 = scalar_lea.sflag [#allocation4], 1
    %18 = vsyncpa %s17, 0
    loop: start=0, step=1, limit=10
    $region2: #{_ffn_impl.1} parent=1 // loop_pre_header
      _
    $region3: #{_ffn_impl.1} parent=1 // loop_header
      %s20 = sphi 0, %s24
      %p21 = scmp.ge.s32.totalorder %s20, 10
      %s27 = sphi 0, %s39
      %s28 = sphi 0, %s35
      %s29 = sphi 0, %s27
      %s30 = sphi 0, %s28
      %s31 = sphi 0, %s29
      %s32 = sphi 0, %s30
      %s42 = sphi 0, %s44
      %s45 = sphi 0, %s42
      %s46 = sphi 0, %s45
      %s62 = sphi 0, %s46
      %s68 = sphi 0, %s70
      %s71 = sphi 0, %s68
      %s72 = sphi 0, %s71
      %s88 = sphi 0, %s72
      %s94 = sphi 0, %s96
      %s97 = sphi 0, %s94
      %s98 = sphi 0, %s97
      %s114 = sphi 0, %s98
      %s120 = sphi 0, %s122
      %s123 = sphi 0, %s120
      %s124 = sphi 0, %s123
      %s140 = sphi 0, %s124
      %s144 = sphi 0, %s144
      %s146 = sphi 0, %s144
      %s147 = sphi 0, %s146
      %s161 = sphi 0, %s147
      %s167 = sphi 0, %s169
      %s170 = sphi 0, %s167
      %s171 = sphi 0, %s170
      %s187 = sphi 0, %s171
    $region4: #{_ffn_impl.1} parent=1 // loop_header_branch
      %23 = sbr.rel (%p21) target = $region8
    $region5: #{_ffn_impl.1} parent=1 // loop_body
      %s25 = ssub.s32 %s20, 1
      %s26 = ssub.s32 %s20, 2
      %s33 = sadd.s32 1, %s28
      %p34 = scmp.ge.s32.totalorder %s33, 4
      %s35 = scalar_select %p34, 0, %s33
      %s36 = sadd.s32 1, %s27
      %s37 = scalar_select %p34, %s36, %s27
      %p38 = scmp.ge.s32.totalorder %s37, 2
      %s39 = scalar_select %p38, 0, %s37
      %s40 = ssub.s32 %s27, %s39
      %p41 = scmp.eq.s32.totalorder %s40, 0
      %s43 = sadd.s32 %s42, 1
      %s44 = scalar_select %p41, %s42, %s43
      %p47 = pneg %p41
      %p48 = scmp.eq.s32.totalorder %s20, 7
      %p49 = por %p47, %p48
      %p50 = scmp.ne.s32.totalorder %s42, %s45
      %p51 = scmp.eq.s32.totalorder %s20, 0
      %p52 = por %p50, %p51
      %p53 = scmp.ne.s32.totalorder %s42, %s45
      %p54 = scmp.eq.s32.totalorder %s25, 7
      %p55 = por %p53, %p54
      %p56 = scmp.ne.s32.totalorder %s45, %s46
      %p57 = scmp.eq.s32.totalorder %s25, 0
      %p58 = por %p56, %p57
      %p59 = scmp.ne.s32.totalorder %s45, %s46
      %p60 = scmp.eq.s32.totalorder %s26, 7
      %p61 = por %p59, %p60
      %p63 = scmp.ne.s32.totalorder %s46, %s62
      %p64 = scmp.eq.s32.totalorder %s26, 0
      %p65 = por %p63, %p64
      %s66 = ssub.s32 %s28, %s35
      %p67 = scmp.eq.s32.totalorder %s66, 0
      %s69 = sadd.s32 %s68, 1
      %s70 = scalar_select %p67, %s68, %s69
      %p73 = pneg %p67
      %p74 = scmp.eq.s32.totalorder %s20, 7
      %p75 = por %p73, %p74
      %p76 = scmp.ne.s32.totalorder %s68, %s71
      %p77 = scmp.eq.s32.totalorder %s20, 0
      %p78 = por %p76, %p77
      %p79 = scmp.ne.s32.totalorder %s68, %s71
      %p80 = scmp.eq.s32.totalorder %s25, 7
      %p81 = por %p79, %p80
      %p82 = scmp.ne.s32.totalorder %s71, %s72
      %p83 = scmp.eq.s32.totalorder %s25, 0
      %p84 = por %p82, %p83
      %p85 = scmp.ne.s32.totalorder %s71, %s72
      %p86 = scmp.eq.s32.totalorder %s26, 7
      %p87 = por %p85, %p86
      %p89 = scmp.ne.s32.totalorder %s72, %s88
      %p90 = scmp.eq.s32.totalorder %s26, 0
      %p91 = por %p89, %p90
      %s92 = ssub.s32 %s28, %s35
      %p93 = scmp.eq.s32.totalorder %s92, 0
      %s95 = sadd.s32 %s94, 1
      %s96 = scalar_select %p93, %s94, %s95
      %p99 = pneg %p93
      %p100 = scmp.eq.s32.totalorder %s20, 7
      %p101 = por %p99, %p100
      %p102 = scmp.ne.s32.totalorder %s94, %s97
      %p103 = scmp.eq.s32.totalorder %s20, 0
      %p104 = por %p102, %p103
      %p105 = scmp.ne.s32.totalorder %s94, %s97
      %p106 = scmp.eq.s32.totalorder %s25, 7
      %p107 = por %p105, %p106
      %p108 = scmp.ne.s32.totalorder %s97, %s98
      %p109 = scmp.eq.s32.totalorder %s25, 0
      %p110 = por %p108, %p109
      %p111 = scmp.ne.s32.totalorder %s97, %s98
      %p112 = scmp.eq.s32.totalorder %s26, 7
      %p113 = por %p111, %p112
      %p115 = scmp.ne.s32.totalorder %s98, %s114
      %p116 = scmp.eq.s32.totalorder %s26, 0
      %p117 = por %p115, %p116
      %s118 = ssub.s32 %s28, %s35
      %p119 = scmp.eq.s32.totalorder %s118, 0
      %s121 = sadd.s32 %s120, 1
      %s122 = scalar_select %p119, %s120, %s121
      %p125 = pneg %p119
      %p126 = scmp.eq.s32.totalorder %s20, 7
      %p127 = por %p125, %p126
      %p128 = scmp.ne.s32.totalorder %s120, %s123
      %p129 = scmp.eq.s32.totalorder %s20, 0
      %p130 = por %p128, %p129
      %p131 = scmp.ne.s32.totalorder %s120, %s123
      %p132 = scmp.eq.s32.totalorder %s25, 7
      %p133 = por %p131, %p132
      %p134 = scmp.ne.s32.totalorder %s123, %s124
      %p135 = scmp.eq.s32.totalorder %s25, 0
      %p136 = por %p134, %p135
      %p137 = scmp.ne.s32.totalorder %s123, %s124
      %p138 = scmp.eq.s32.totalorder %s26, 7
      %p139 = por %p137, %p138
      %p141 = scmp.ne.s32.totalorder %s124, %s140
      %p142 = scmp.eq.s32.totalorder %s26, 0
      %p143 = por %p141, %p142
      %s145 = sadd.s32 %s144, 1
      %p148 = scmp.eq.s32.totalorder %s20, 7
      %p149 = scmp.ne.s32.totalorder %s144, %s146
      %p150 = scmp.eq.s32.totalorder %s20, 0
      %p151 = por %p149, %p150
      %p152 = scmp.ne.s32.totalorder %s144, %s146
      %p153 = scmp.eq.s32.totalorder %s25, 7
      %p154 = por %p152, %p153
      %p155 = scmp.ne.s32.totalorder %s146, %s147
      %p156 = scmp.eq.s32.totalorder %s25, 0
      %p157 = por %p155, %p156
      %p158 = scmp.ne.s32.totalorder %s146, %s147
      %p159 = scmp.eq.s32.totalorder %s26, 7
      %p160 = por %p158, %p159
      %p162 = scmp.ne.s32.totalorder %s147, %s161
      %p163 = scmp.eq.s32.totalorder %s26, 0
      %p164 = por %p162, %p163
      %s165 = ssub.s32 %s27, %s39
      %p166 = scmp.eq.s32.totalorder %s165, 0
      %s168 = sadd.s32 %s167, 1
      %s169 = scalar_select %p166, %s167, %s168
      %p172 = pneg %p166
      %p173 = scmp.eq.s32.totalorder %s20, 7
      %p174 = por %p172, %p173
      %p175 = scmp.ne.s32.totalorder %s167, %s170
      %p176 = scmp.eq.s32.totalorder %s20, 0
      %p177 = por %p175, %p176
      %p178 = scmp.ne.s32.totalorder %s167, %s170
      %p179 = scmp.eq.s32.totalorder %s25, 7
      %p180 = por %p178, %p179
      %p181 = scmp.ne.s32.totalorder %s170, %s171
      %p182 = scmp.eq.s32.totalorder %s25, 0
      %p183 = por %p181, %p182
      %p184 = scmp.ne.s32.totalorder %s170, %s171
      %p185 = scmp.eq.s32.totalorder %s26, 7
      %p186 = por %p184, %p185
      %p188 = scmp.ne.s32.totalorder %s171, %s187
      %p189 = scmp.eq.s32.totalorder %s26, 0
      %p190 = por %p188, %p189
      %p191 = scmp.le.s32.totalorder 1, %s20
      %p192 = scmp.lt.s32.totalorder %s20, 9
      %p193 = pnand %p191, %p192
      %p194 = pneg %p193
      // Predicated region
      $region9: #{_ffn_impl.1} parent=5 // pred_check
        _
      $region10: #{_ffn_impl.1} parent=5 // pred_check_branch
        %196 = sbr.rel (%p193) target = $region12
      $region11: #{_ffn_impl.1} parent=5 // pred_region
        %s197 = ssub.s32 %s20, 1
        // Predicated region
        $region13: #{_ffn_impl.1} parent=11 // pred_check
          %p198 = pneg %p157
        $region14: #{_ffn_impl.1} parent=11 // pred_check_branch
          %200 = sbr.rel (%p198) target = $region16
        $region15: #{_ffn_impl.1} parent=11 // pred_region
          _
        $region16: #{_ffn_impl.1} parent=11 // pred_fallthru
          _
      $region12: #{_ffn_impl.1} parent=5 // pred_fallthru
        _
      %p201 = scmp.lt.s32.totalorder %s20, 8
      // Predicated region
      $region17: #{_ffn_impl.1} parent=5 // pred_check
        %p202 = pneg %p201
      $region18: #{_ffn_impl.1} parent=5 // pred_check_branch
        %204 = sbr.rel (%p202) target = $region20
      $region19: #{_ffn_impl.1} parent=5 // pred_region
        // Predicated region
        $region21: #{_ffn_impl.1} parent=19 // pred_check
          %p205 = pneg %p52
        $region22: #{_ffn_impl.1} parent=19 // pred_check_branch
          %207 = sbr.rel (%p205) target = $region24
        $region23: #{_ffn_impl.1} parent=19 // pred_region
          %s208 = sand.u32 %s42, 1
          %s209 = scalar_lea.sflag [#allocation3], %s208
          %s210 = sand.u32 %s42, 1
          %s211 = smul.addr %s210, 8
          %s212 = scalar_lea.vmem [#allocation2], %s211
          %s214 = ssub.s32 128, 128
          %215 = vsyncadd %s209, %s214
          %s216 = smul.addr %s27, 128
          %s217 = scalar_lea.hbm %s0, %s216
          %s219 = sshll.u32 %s212, 4
          %s220 = int_to_ptr.vmem [resolvable:$true] %s219
          %222 = dma.hbm_to_vmem [thread:$0]  %s217, 128, %s220, %s209
        $region24: #{_ffn_impl.1} parent=19 // pred_fallthru
          _
        // Predicated region
        $region25: #{_ffn_impl.1} parent=19 // pred_check
          %p223 = pneg %p78
        $region26: #{_ffn_impl.1} parent=19 // pred_check_branch
          %225 = sbr.rel (%p223) target = $region28
        $region27: #{_ffn_impl.1} parent=19 // pred_region
          %s226 = sand.u32 %s20, 1
          %s227 = scalar_lea.sflag [#allocation6], %s226
          %s228 = sand.u32 %s68, 1
          %s229 = smul.addr %s228, 64
          %s230 = scalar_lea.vmem [#allocation5], %s229
          %s232 = ssub.s32 1024, 1024
          %233 = vsyncadd %s227, %s232
          %s234 = smul.addr %s28, 64
          %s235 = scalar_lea.hbm %s1, %s234
          %s236 = sshll.u32 %s230, 4
          %s237 = int_to_ptr.vmem [resolvable:$true] %s236
          %242 = dma.hbm_to_vmem [thread:$0]  %s235, 1024, %s237, %s227, 256, 64, 4
        $region28: #{_ffn_impl.1} parent=19 // pred_fallthru
          _
        // Predicated region
        $region29: #{_ffn_impl.1} parent=19 // pred_check
          %p243 = pneg %p104
        $region30: #{_ffn_impl.1} parent=19 // pred_check_branch
          %245 = sbr.rel (%p243) target = $region32
        $region31: #{_ffn_impl.1} parent=19 // pred_region
          %p246 = scmp.lt.s32.totalorder %s28, 3
          %s247 = scalar_select %p246, %s28, 3
          %s248 = scalar_lea.vmem %s2, %s247
        $region32: #{_ffn_impl.1} parent=19 // pred_fallthru
          _
        // Predicated region
        $region33: #{_ffn_impl.1} parent=19 // pred_check
          %p249 = pneg %p130
        $region34: #{_ffn_impl.1} parent=19 // pred_check_branch
          %251 = sbr.rel (%p249) target = $region36
        $region35: #{_ffn_impl.1} parent=19 // pred_region
          %s252 = sand.u32 %s20, 1
          %s253 = scalar_lea.sflag [#allocation6], %s252
          %s254 = sand.u32 %s120, 1
          %s255 = smul.addr %s254, 64
          %s256 = scalar_lea.vmem [#allocation7], %s255
          %s257 = smul.u32 16, %s28
          %s259 = ssub.s32 1024, 1024
          %260 = vsyncadd %s253, %s259
          %s261 = smul.addr %s257, 64
          %s262 = scalar_lea.hbm %s3, %s261
          %s263 = sshll.u32 %s256, 4
          %s264 = int_to_ptr.vmem [resolvable:$true] %s263
          %269 = dma.hbm_to_vmem [thread:$0]  %s262, 1024, %s264, %s253, 64, 64, 4
        $region36: #{_ffn_impl.1} parent=19 // pred_fallthru
          _
      $region20: #{_ffn_impl.1} parent=5 // pred_fallthru
        _
      %p270 = scmp.le.s32.totalorder 1, %s20
      %p271 = scmp.lt.s32.totalorder %s20, 9
      %p272 = pnand %p270, %p271
      %p273 = pneg %p272
      // Predicated region
      $region37: #{_ffn_impl.1} parent=5 // pred_check
        _
      $region38: #{_ffn_impl.1} parent=5 // pred_check_branch
        %275 = sbr.rel (%p272) target = $region40
      $region39: #{_ffn_impl.1} parent=5 // pred_region
        %s276 = ssub.s32 %s20, 1
        %s277 = sand.u32 %s45, 1
        %s278 = scalar_lea.sflag [#allocation3], %s277
        %s279 = sand.u32 %s45, 1
        %s280 = smul.addr %s279, 8
        %s281 = scalar_lea.vmem [#allocation2], %s280
        // Predicated region
        $region41: #{_ffn_impl.1} parent=39 // pred_check
          %p282 = pneg %p58
        $region42: #{_ffn_impl.1} parent=39 // pred_check_branch
          %284 = sbr.rel (%p282) target = $region44
        $region43: #{_ffn_impl.1} parent=39 // pred_region
          %285 = dma.done %s278, 128
        $region44: #{_ffn_impl.1} parent=39 // pred_fallthru
          _
        %s286 = sand.u32 %s25, 1
        %s287 = scalar_lea.sflag [#allocation6], %s286
        %s288 = sand.u32 %s71, 1
        %s289 = smul.addr %s288, 64
        %s290 = scalar_lea.vmem [#allocation5], %s289
        // Predicated region
        $region45: #{_ffn_impl.1} parent=39 // pred_check
          %p291 = pneg %p84
        $region46: #{_ffn_impl.1} parent=39 // pred_check_branch
          %293 = sbr.rel (%p291) target = $region48
        $region47: #{_ffn_impl.1} parent=39 // pred_region
          %294 = dma.done %s287, 1024
        $region48: #{_ffn_impl.1} parent=39 // pred_fallthru
          _
        %s295 = sand.u32 %s25, 1
        %s296 = scalar_lea.sflag [#allocation6], %s295
        %s297 = sand.u32 %s123, 1
        %s298 = smul.addr %s297, 64
        %s299 = scalar_lea.vmem [#allocation7], %s298
        // Predicated region
        $region49: #{_ffn_impl.1} parent=39 // pred_check
          %p300 = pneg %p136
        $region50: #{_ffn_impl.1} parent=39 // pred_check_branch
          %302 = sbr.rel (%p300) target = $region52
        $region51: #{_ffn_impl.1} parent=39 // pred_region
          %303 = dma.done %s296, 1024
        $region52: #{_ffn_impl.1} parent=39 // pred_fallthru
          _
        %s304 = sand.u32 %s45, 1
        %s305 = scalar_lea.sflag [#allocation3], %s304
        %s306 = sand.u32 %s45, 1
        %s307 = smul.addr %s306, 8
        %s308 = scalar_lea.vmem [#allocation2], %s307
        %p309 = pneg %p58
        %p310 = pneg %p55
        %s311 = sand.u32 %s25, 1
        %s312 = scalar_lea.sflag [#allocation6], %s311
        %s313 = sand.u32 %s71, 1
        %s314 = smul.addr %s313, 64
        %s315 = scalar_lea.vmem [#allocation5], %s314
        %p316 = pneg %p84
        %p317 = pneg %p81
        %p318 = scmp.lt.s32.totalorder %s30, 3
        %s319 = scalar_select %p318, %s30, 3
        %s320 = scalar_lea.vmem %s2, %s319
        %p321 = pneg %p110
        %p322 = pneg %p107
        %s323 = sand.u32 %s25, 1
        %s324 = scalar_lea.sflag [#allocation6], %s323
        %s325 = sand.u32 %s123, 1
        %s326 = smul.addr %s325, 64
        %s327 = scalar_lea.vmem [#allocation7], %s326
        %p328 = pneg %p136
        %p329 = pneg %p133
        %p330 = pneg %p157
        %p331 = pneg %p154
        %p332 = pneg %p183
        %p333 = pneg %p180
        %s334 = sand.u32 %s170, 1
        %s335 = scalar_lea.sflag [#allocation4], %s334
        %s336 = sand.u32 %s170, 1
        %s337 = smul.addr %s336, 8
        %s338 = scalar_lea.vmem [#allocation8], %s337
        %p339 = scmp.lt.s32.totalorder %s30, 3
        %s340 = scalar_select %p339, %s30, 3
        %s341 = scalar_lea.vmem %s2, %s340
        %s342 = smul.u32 16, %s30
        %p344 = scmp.eq.s32.totalorder %s30, 0
        // Predicated region
        $region53: #{_ffn_impl.1} parent=39 // pred_check
          %p345 = pneg %p344
        $region54: #{_ffn_impl.1} parent=39 // pred_check_branch
          %347 = sbr.rel (%p345) target = $region56
        $region55: #{_ffn_impl.1} parent=39 // pred_region
          %v348 = vld [vmem:[%s4] sm:$0x1]
          %v350 = vlaneseq
          %v351 = vshrl.u32 %v350, 7
          %v352 = vsub.s32 0, %v351
          %v353 = vrot.slane %v348, %v352
          %355 = vst [vmem:[%s338] sm:$0xff] %v353
        $region56: #{_ffn_impl.1} parent=39 // pred_fallthru
          _
        %v356 = vld [vmem:[%s281] sm:$0xff]
        %v357 = vpack.c.bf16 %v356, %v356
        %v358 = vld [vmem:[%s290] sm:$0xf]
        %v359 = vld [vmem:[%s290 + $0x4] sm:$0xf]
        %v360 = vld [vmem:[%s290 + $0x8] sm:$0xf]
        %v361 = vld [vmem:[%s290 + $0xc] sm:$0xf]
        %v362 = vld [vmem:[%s290 + $0x10] sm:$0xf]
        %v363 = vld [vmem:[%s290 + $0x14] sm:$0xf]
        %v364 = vld [vmem:[%s290 + $0x18] sm:$0xf]
        %v365 = vld [vmem:[%s290 + $0x1c] sm:$0xf]
        %v366 = vld [vmem:[%s290 + $0x20] sm:$0xf]
        %v367 = vld [vmem:[%s290 + $0x24] sm:$0xf]
        %v368 = vld [vmem:[%s290 + $0x28] sm:$0xf]
        %v369 = vld [vmem:[%s290 + $0x2c] sm:$0xf]
        %v370 = vld [vmem:[%s290 + $0x30] sm:$0xf]
        %v371 = vld [vmem:[%s290 + $0x34] sm:$0xf]
        %v372 = vld [vmem:[%s290 + $0x38] sm:$0xf]
        %v373 = vld [vmem:[%s290 + $0x3c] sm:$0xf]
        %v374 = vld [vmem:[%s341] sm:$0x1]
        %v376 = vlaneseq
        %v377 = vshrl.u32 %v376, 7
        %v378 = vsub.s32 0, %v377
        %v379 = vrot.slane %v374, %v378
        %v397 = vunpack.c.l.b16 %v358
        %v398 = vunpack.c.l.b16 %v359
        %v399 = vunpack.c.l.b16 %v360
        %v400 = vunpack.c.l.b16 %v361
        %v401 = vunpack.c.l.b16 %v362
        %v402 = vunpack.c.l.b16 %v363
        %v403 = vunpack.c.l.b16 %v364
        %v404 = vunpack.c.l.b16 %v365
        %v405 = vunpack.c.l.b16 %v366
        %v406 = vunpack.c.l.b16 %v367
        %v407 = vunpack.c.l.b16 %v368
        %v408 = vunpack.c.l.b16 %v369
        %v409 = vunpack.c.l.b16 %v370
        %v410 = vunpack.c.l.b16 %v371
        %v411 = vunpack.c.l.b16 %v372
        %v412 = vunpack.c.l.b16 %v373
        %v413 = vpack.c.b16 %v398, %v397
        %v414 = vpack.c.b16 %v400, %v399
        %v415 = vpack.c.b16 %v402, %v401
        %v416 = vpack.c.b16 %v404, %v403
        %v417 = vpack.c.b16 %v406, %v405
        %v418 = vpack.c.b16 %v408, %v407
        %v419 = vpack.c.b16 %v410, %v409
        %v420 = vpack.c.b16 %v412, %v411
        %429 = vmatprep.subr.bf16.mxu0 0
        %430 = vmatpush1.bf16.msra.mxu0 %v413
        %431 = vmatprep.subr.bf16.mxu0 0
        %432 = vmatpush1.bf16.msra.mxu0 %v414
        %433 = vmatprep.subr.bf16.mxu0 0
        %434 = vmatpush1.bf16.msra.mxu0 %v415
        %435 = vmatprep.subr.bf16.mxu0 0
        %436 = vmatpush1.bf16.msra.mxu0 %v416
        %437 = vmatprep.subr.bf16.mxu0 0
        %438 = vmatpush1.bf16.msra.mxu0 %v417
        %439 = vmatprep.subr.bf16.mxu0 0
        %440 = vmatpush1.bf16.msra.mxu0 %v418
        %441 = vmatprep.subr.bf16.mxu0 0
        %442 = vmatpush1.bf16.msra.mxu0 %v419
        %443 = vmatprep.subr.bf16.mxu0 0
        %444 = vmatpush1.bf16.msra.mxu0 %v420
        %445 = vmatprep.subr.bf16.mxu0 0
        %446 = vmatpush1.bf16.msra.mxu0 0
        %447 = vmatprep.subr.bf16.mxu0 0
        %448 = vmatpush1.bf16.msra.mxu0 0
        %449 = vmatprep.subr.bf16.mxu0 0
        %450 = vmatpush1.bf16.msra.mxu0 0
        %451 = vmatprep.subr.bf16.mxu0 0
        %452 = vmatpush1.bf16.msra.mxu0 0
        %453 = vmatprep.subr.bf16.mxu0 0
        %454 = vmatpush1.bf16.msra.mxu0 0
        %455 = vmatprep.subr.bf16.mxu0 0
        %456 = vmatpush1.bf16.msra.mxu0 0
        %457 = vmatprep.subr.bf16.mxu0 0
        %458 = vmatpush1.bf16.msra.mxu0 0
        %459 = vmatprep.subr.bf16.mxu0 0
        %460 = vmatpush1.bf16.msra.mxu0 0
        %461 = vmatprep.mubr.bf16.mxu0 0
        %462 = vmatmul.mubr.bf16.gmra.mrb[0].mxu0 %v357
        %v463 = vpop.f32.mrb[0].mxu0
        %v464 = vadd.f32 %v379, %v463
        %v465 = vpop.f32.mrb[0].mxu0
        %v466 = vpop.f32.mrb[0].mxu0
        %v467 = vpop.f32.mrb[0].mxu0
        %468 = vdwg.mxu0
        %v469 = vmax.f32 %v464, 0.0
        %v470 = vld [vmem:[%s338] sm:$0xff]
        %v471 = vpack.c.bf16 %v469, %v469
        %v472 = vld [vmem:[%s299] sm:$0xf]
        %v473 = vld [vmem:[%s299 + $0x4] sm:$0xf]
        %v474 = vld [vmem:[%s299 + $0x8] sm:$0xf]
        %v475 = vld [vmem:[%s299 + $0xc] sm:$0xf]
        %v476 = vld [vmem:[%s299 + $0x10] sm:$0xf]
        %v477 = vld [vmem:[%s299 + $0x14] sm:$0xf]
        %v478 = vld [vmem:[%s299 + $0x18] sm:$0xf]
        %v479 = vld [vmem:[%s299 + $0x1c] sm:$0xf]
        %v480 = vld [vmem:[%s299 + $0x20] sm:$0xf]
        %v481 = vld [vmem:[%s299 + $0x24] sm:$0xf]
        %v482 = vld [vmem:[%s299 + $0x28] sm:$0xf]
        %v483 = vld [vmem:[%s299 + $0x2c] sm:$0xf]
        %v484 = vld [vmem:[%s299 + $0x30] sm:$0xf]
        %v485 = vld [vmem:[%s299 + $0x34] sm:$0xf]
        %v486 = vld [vmem:[%s299 + $0x38] sm:$0xf]
        %v487 = vld [vmem:[%s299 + $0x3c] sm:$0xf]
        %v504 = vunpack.c.l.b16 %v472
        %v505 = vunpack.c.l.b16 %v473
        %v506 = vunpack.c.l.b16 %v474
        %v507 = vunpack.c.l.b16 %v475
        %v508 = vunpack.c.l.b16 %v476
        %v509 = vunpack.c.l.b16 %v477
        %v510 = vunpack.c.l.b16 %v478
        %v511 = vunpack.c.l.b16 %v479
        %v512 = vunpack.c.l.b16 %v480
        %v513 = vunpack.c.l.b16 %v481
        %v514 = vunpack.c.l.b16 %v482
        %v515 = vunpack.c.l.b16 %v483
        %v516 = vunpack.c.l.b16 %v484
        %v517 = vunpack.c.l.b16 %v485
        %v518 = vunpack.c.l.b16 %v486
        %v519 = vunpack.c.l.b16 %v487
        %v520 = vpack.c.b16 %v505, %v504
        %v521 = vpack.c.b16 %v507, %v506
        %v522 = vpack.c.b16 %v509, %v508
        %v523 = vpack.c.b16 %v511, %v510
        %v524 = vpack.c.b16 %v513, %v512
        %v525 = vpack.c.b16 %v515, %v514
        %v526 = vpack.c.b16 %v517, %v516
        %v527 = vpack.c.b16 %v519, %v518
        %536 = vmatprep.subr.bf16.mxu0 0
        %537 = vmatpush1.bf16.msra.mxu0 %v520
        %538 = vmatprep.subr.bf16.mxu0 0
        %539 = vmatpush1.bf16.msra.mxu0 %v521
        %540 = vmatprep.subr.bf16.mxu0 0
        %541 = vmatpush1.bf16.msra.mxu0 %v522
        %542 = vmatprep.subr.bf16.mxu0 0
        %543 = vmatpush1.bf16.msra.mxu0 %v523
        %544 = vmatprep.subr.bf16.mxu0 0
        %545 = vmatpush1.bf16.msra.mxu0 %v524
        %546 = vmatprep.subr.bf16.mxu0 0
        %547 = vmatpush1.bf16.msra.mxu0 %v525
        %548 = vmatprep.subr.bf16.mxu0 0
        %549 = vmatpush1.bf16.msra.mxu0 %v526
        %550 = vmatprep.subr.bf16.mxu0 0
        %551 = vmatpush1.bf16.msra.mxu0 %v527
        %552 = vmatprep.subr.bf16.mxu0 0
        %553 = vmatpush1.bf16.msra.mxu0 0
        %554 = vmatprep.subr.bf16.mxu0 0
        %555 = vmatpush1.bf16.msra.mxu0 0
        %556 = vmatprep.subr.bf16.mxu0 0
        %557 = vmatpush1.bf16.msra.mxu0 0
        %558 = vmatprep.subr.bf16.mxu0 0
        %559 = vmatpush1.bf16.msra.mxu0 0
        %560 = vmatprep.subr.bf16.mxu0 0
        %561 = vmatpush1.bf16.msra.mxu0 0
        %562 = vmatprep.subr.bf16.mxu0 0
        %563 = vmatpush1.bf16.msra.mxu0 0
        %564 = vmatprep.subr.bf16.mxu0 0
        %565 = vmatpush1.bf16.msra.mxu0 0
        %566 = vmatprep.subr.bf16.mxu0 0
        %567 = vmatpush1.bf16.msra.mxu0 0
        %568 = vmatprep.mubr.bf16.mxu0 0
        %569 = vmatmul.mubr.bf16.gmra.mrb[0].mxu0 %v471
        %v570 = vpop.f32.mrb[0].mxu0
        %v571 = vadd.f32 0.0, %v570
        %v572 = vpop.f32.mrb[0].mxu0
        %v573 = vpop.f32.mrb[0].mxu0
        %v574 = vpop.f32.mrb[0].mxu0
        %575 = vdwg.mxu0
        %v576 = vadd.f32 %v470, %v571
        %577 = vst [vmem:[%s338] sm:$0xff] %v576
        %s578 = sand.u32 %s170, 1
        %s579 = scalar_lea.sflag [#allocation4], %s578
        %s580 = sand.u32 %s170, 1
        %s581 = smul.addr %s580, 8
        %s582 = scalar_lea.vmem [#allocation8], %s581
        // Predicated region
        $region57: #{_ffn_impl.1} parent=39 // pred_check
          %p583 = pneg %p180
        $region58: #{_ffn_impl.1} parent=39 // pred_check_branch
          %585 = sbr.rel (%p583) target = $region60
        $region59: #{_ffn_impl.1} parent=39 // pred_region
          %s587 = ssub.s32 128, 128
          %588 = vsyncadd %s579, %s587
          %s589 = smul.addr %s29, 128
          %s590 = scalar_lea.hbm %s5, %s589
          %s592 = sshll.u32 %s582, 4
          %s593 = int_to_ptr.vmem [resolvable:$true] %s592
          %595 = dma.vmem_to_hbm [thread:$0]  %s593, 128, %s590, %s579
        $region60: #{_ffn_impl.1} parent=39 // pred_fallthru
          _
      $region40: #{_ffn_impl.1} parent=5 // pred_fallthru
        _
      %p596 = scmp.le.s32.totalorder 2, %s20
      // Predicated region
      $region61: #{_ffn_impl.1} parent=5 // pred_check
        %p597 = pneg %p596
      $region62: #{_ffn_impl.1} parent=5 // pred_check_branch
        %599 = sbr.rel (%p597) target = $region64
      $region63: #{_ffn_impl.1} parent=5 // pred_region
        %s600 = ssub.s32 %s20, 2
        // Predicated region
        $region65: #{_ffn_impl.1} parent=63 // pred_check
          %p601 = pneg %p186
        $region66: #{_ffn_impl.1} parent=63 // pred_check_branch
          %603 = sbr.rel (%p601) target = $region68
        $region67: #{_ffn_impl.1} parent=63 // pred_region
          %s604 = sand.u32 %s171, 1
          %s605 = scalar_lea.sflag [#allocation4], %s604
          %s606 = sand.u32 %s171, 1
          %s607 = smul.addr %s606, 8
          %s608 = scalar_lea.vmem [#allocation8], %s607
          %609 = dma.done %s605, 128
        $region68: #{_ffn_impl.1} parent=63 // pred_fallthru
          _
      $region64: #{_ffn_impl.1} parent=5 // pred_fallthru
        _
    $region6: #{_ffn_impl.1} parent=1 // loop_footer
      %s24 = sadd.s32 1, %s20
    $region7: #{_ffn_impl.1} parent=1 // loop_footer_branch
      %19 = sbr.rel target = $region3
    $region8: #{_ffn_impl.1} parent=1 // loop_exit
      _
    %610 = vsyncpa [#allocation3], 1
    %s611 = scalar_lea.sflag [#allocation3], 1
    %612 = vsyncpa %s611, 1
    %613 = vsyncpa [#allocation6], 1
    %s614 = scalar_lea.sflag [#allocation6], 1
    %615 = vsyncpa %s614, 1
    %616 = vsyncpa [#allocation4], 1
    %s617 = scalar_lea.sflag [#allocation4], 1
    %618 = vsyncpa %s617, 1

</llo_original>
